<compile_context>
chip_gen: v7x
topology: tpu7x:2x2x1
jax: 0.10.0
libtpu: 0.0.40
codegen_flags: <defaults>
</compile_context>

<pallas_src>
import jax
import jax.numpy as jnp
from jax.experimental import pallas as pl
from jax.experimental.pallas import tpu as pltpu


def _hsigmoid_kernel(x_ref, o_ref):
    # fp32 op-math (matches PyTorch's opmath for half/bf16 elementwise ops).
    x = x_ref[...].astype(jnp.float32)
    y = jnp.clip(x + 3.0, 0.0, 6.0) * (1.0 / 6.0)
    o_ref[...] = y.astype(o_ref.dtype)


_ALIGNED_WIDTHS = (2048, 1024, 512, 256, 128)


def _choose_width(n):
    """Widest lane-dense last dim (multiple of 128) dividing n, else pad path."""
    for w in _ALIGNED_WIDTHS:
        if n % w == 0:
            return w, False
    return 128, True  # pad path: pad only to a multiple of 128 (minimal waste)


def _num_tensorcores():
    """TensorCores sharing this device's grid (v7x: 2, v5e/v6e: 1)."""
    try:
        dev = jax.devices()[0]
        nc = getattr(dev, "num_cores", None)
        if isinstance(nc, int) and nc > 1:
            return nc
        kind = str(getattr(dev, "device_kind", "")).lower()
        if "7" in kind:  # v7x family: 2 TCs per chip
            return 2
    except Exception:
        pass
    return 1


def _vmem_budget():
    """(vmem_limit_bytes, target block bytes), generation-aware with headroom."""
    limit = 40 * 1024 * 1024  # fits v7x (64 MiB phys) and v5e/v6e (128 MiB phys)
    try:
        cap = int(pltpu.get_tpu_info().vmem_capacity_bytes)
        limit = min(limit, (cap * 3) // 4)
    except Exception:
        pass
    # Pipeline holds 2 buffers x (in + out) = 4x the block; keep extra headroom.
    block = min(8 * 1024 * 1024, limit // 5)
    return limit, block


def _choose_tile_rows(rows, width, itemsize, num_cores, block_bytes):
    # Sublane packing floor: 8 for f32, 16 for bf16/f16, 32 for int8/fp8.
    sub = max(8, 32 // itemsize)
    if rows <= sub:
        return rows  # single full-extent block (equals full array dim: allowed)
    cap = max(sub, (block_bytes // (width * itemsize)) // sub * sub)
    num_steps = pl.cdiv(rows, cap)
    if num_cores > 1:
        # Even, near-equal split so dimension_semantics=("parallel",) gives each
        # TensorCore balanced work (fixes the old 256-vs-4 row pathology).
        num_steps = pl.cdiv(num_steps, num_cores) * num_cores
    tile_rows = pl.cdiv(pl.cdiv(rows, num_steps), sub) * sub
    return max(sub, min(tile_rows, (rows // sub) * sub))


def hsigmoid(x, *, donate=False):
    """Elementwise hard-sigmoid (relu6(x+3)/6) via a Pallas TPU kernel. Any shape.

    donate=True adds input_output_aliases={0: 0}; only beneficial if the caller
    actually donates x's buffer (otherwise XLA inserts a defensive copy).
    Integer inputs are promoted to (and returned as) float32.
    """
    orig_shape = x.shape
    if not jnp.issubdtype(x.dtype, jnp.floating):
        x = x.astype(jnp.float32)
    dtype = x.dtype
    itemsize = jnp.dtype(dtype).itemsize
    n = x.size
    if n == 0:
        return x.reshape(orig_shape)

    width, needs_pad = _choose_width(n)
    flat = x.reshape(-1)
    if needs_pad:
        # TODO(synk): replace pad+final-slice with an in-kernel masked tail store
        # (scalar-prefetched valid length) to avoid the ~3x HBM traffic on the
        # rare unaligned path.
        n_pad = pl.cdiv(n, width) * width
        flat = jnp.pad(flat, (0, n_pad - n))
    else:
        n_pad = n
    rows = n_pad // width
    slab = flat.reshape(rows, width)

    vmem_limit, block_bytes = _vmem_budget()
    tile_rows = _choose_tile_rows(rows, width, itemsize, _num_tensorcores(),
                                  block_bytes)
    grid = (pl.cdiv(rows, tile_rows),)  # ragged last block handled by Pallas

    out = pl.pallas_call(
        _hsigmoid_kernel,
        out_shape=jax.ShapeDtypeStruct((rows, width), dtype),
        grid_spec=pltpu.PrefetchScalarGridSpec(
            num_scalar_prefetch=0,
            grid=grid,
            in_specs=[pl.BlockSpec((tile_rows, width), lambda i: (i, 0))],
            out_specs=pl.BlockSpec((tile_rows, width), lambda i: (i, 0)),
        ),
        compiler_params=pltpu.CompilerParams(
            dimension_semantics=("parallel",),
            vmem_limit_bytes=vmem_limit,
        ),
        cost_estimate=pl.CostEstimate(
            flops=4 * n_pad,
            transcendentals=0,
            bytes_accessed=2 * n_pad * itemsize,
        ),
        input_output_aliases=({0: 0} if (donate and not needs_pad) else {}),
    )(slab)

    if needs_pad:
        return out.reshape(-1)[:n].reshape(orig_shape)
    return out.reshape(orig_shape)


def _ref(x):
    return jnp.clip(x.astype(jnp.float32) + 3.0, 0.0, 6.0) / 6.0


if __name__ == "__main__":
    key = jax.random.PRNGKey(0)
    k0, k1, k2 = jax.random.split(key, 3)

    # Primary case: NCHW f32, same convention the PyTorch module sees.
    x = jax.random.normal(k0, (2, 4, 16, 16), dtype=jnp.float32) * 4.0
    y = jax.block_until_ready(hsigmoid(x))
    assert y.shape == x.shape and y.dtype == x.dtype
    assert jnp.max(jnp.abs(y.astype(jnp.float32) - _ref(x))) < 1e-6

    # Unaligned size (exercises the pad/slice fallback path).
    x_odd = jax.random.normal(k1, (3, 5, 7), dtype=jnp.float32) * 4.0
    y_odd = jax.block_until_ready(hsigmoid(x_odd))
    assert y_odd.shape == x_odd.shape and y_odd.dtype == x_odd.dtype
    assert jnp.max(jnp.abs(y_odd.astype(jnp.float32) - _ref(x_odd))) < 1e-6

    # bf16 case (half the HBM bytes; fp32 op-math, bf16 store).
    x_bf = (jax.random.normal(k2, (2, 8, 16, 16), dtype=jnp.float32) * 4.0
            ).astype(jnp.bfloat16)
    y_bf = jax.block_until_ready(hsigmoid(x_bf))
    assert y_bf.shape == x_bf.shape and y_bf.dtype == x_bf.dtype
    ref_bf = _ref(x_bf.astype(jnp.float32)).astype(jnp.bfloat16).astype(jnp.float32)
    assert jnp.max(jnp.abs(y_bf.astype(jnp.float32) - ref_bf)) < 1e-2

    print("KERNEL_OK")
</pallas_src>

<mosaic_0001>
module attributes {stable_mosaic.version = 11 : i64} {
  func.func @_hsigmoid_kernel(%arg0: i32, %arg1: memref<1x2048xf32, #tpu.memory_space<vmem>>, %arg2: memref<1x2048xf32, #tpu.memory_space<vmem>>) attributes {dimension_semantics = [#tpu.dimension_semantics<parallel>], iteration_bounds = array<i64: 1>, scalar_prefetch = 0 : i64, scratch_operands = 0 : i64, tpu.core_type = #tpu.core_type<tc>, window_params = [{transform_indices = @transform_0, window_bounds = array<i64: 1, 2048>}, {transform_indices = @transform_1, window_bounds = array<i64: 1, 2048>}]} {
    %c0 = arith.constant 0 : index
    %c0_0 = arith.constant 0 : index
    %0 = vector.load %arg1[%c0, %c0_0] : memref<1x2048xf32, #tpu.memory_space<vmem>>, vector<1x2048xf32>
    %cst = arith.constant 3.000000e+00 : f32
    %1 = vector.broadcast %cst : f32 to vector<1x2048xf32>
    %2 = arith.addf %0, %1 : vector<1x2048xf32>
    %cst_1 = arith.constant 0.000000e+00 : f32
    %cst_2 = arith.constant 6.000000e+00 : f32
    %3 = vector.broadcast %cst_1 : f32 to vector<1x2048xf32>
    %4 = arith.maximumf %3, %2 : vector<1x2048xf32>
    %5 = vector.broadcast %cst_2 : f32 to vector<1x2048xf32>
    %6 = arith.minimumf %5, %4 : vector<1x2048xf32>
    %cst_3 = arith.constant 0.166666672 : f32
    %7 = vector.broadcast %cst_3 : f32 to vector<1x2048xf32>
    %8 = arith.mulf %6, %7 : vector<1x2048xf32>
    %c0_4 = arith.constant 0 : index
    %c0_5 = arith.constant 0 : index
    %9 = vector.load %arg2[%c0_4, %c0_5] : memref<1x2048xf32, #tpu.memory_space<vmem>>, vector<1x2048xf32>
    tpu.vector_store %arg2[%c0_4, %c0_5], %8 {strides = array<i32>} : memref<1x2048xf32, #tpu.memory_space<vmem>>, vector<1x2048xf32>,
    return
  }
  func.func @transform_0(%arg0: i32) -> (i32, i32) {
    %c0_i32 = arith.constant 0 : i32
    %c0_i32_0 = arith.constant 0 : i32
    return %arg0, %c0_i32 : i32, i32
  }
  func.func @transform_1(%arg0: i32) -> (i32, i32) {
    %c0_i32 = arith.constant 0 : i32
    %c0_i32_0 = arith.constant 0 : i32
    return %arg0, %c0_i32 : i32, i32
  }
}

</mosaic_0001>

<llo_original>
// kernel: tpu_custom_call.1
$region0: #{tpu_custom_call.1}
  #allocation0 [shape = 'u32[]', space=smem, size = 0x4, offset = 0x4, fixed_abs, tag = 'smem constant byte address 0x4 - core index']
  #allocation1 [shape = 'u32[144,128]{1,0:T(1,128)}', space=vmem, size = 0x12000, scoped, tag = 'internal scratch']
  %s0 = inlined_call_operand.hbm [shape: f32[1,2048], index: 0, kind: input, shape index: {}]
  %s1 = inlined_call_operand.hbm [shape: f32[1,2048], index: 1, kind: output, shape index: {}]
  %s2 = sld [smem:[#allocation0]]
  $region18: #{tpu_custom_call.1} parent=0
    _
  %s4 = ssub.s32 1, %s2
  %s5 = scalar_select 0, %s4, %s2
  $region1: #{tpu_custom_call.1} parent=0
    #allocation2 [shape = 'u8[8192]{0}', space=vmem, size = 0x2000, scoped, tag = 'input window, operand 0, single buffered']
    #allocation3 [shape = 's32[1]{0}', space=sflag, size = 0x4, scoped, tag = 'scoped memory for tpu_custom_call.1']
    #allocation4 [shape = 's32[1]{0}', space=sflag, size = 0x4, scoped, tag = 'scoped memory for tpu_custom_call.1']
    #allocation5 [shape = 'u8[8192]{0}', space=vmem, size = 0x2000, scoped, tag = 'output window, operand 0, single buffered']
    %6 = vsyncpa [#allocation3], 0
    %7 = vsyncpa [#allocation4], 0
    // Predicated region
    $region2: #{tpu_custom_call.1} parent=1 // pred_check
      _
    $region3: #{tpu_custom_call.1} parent=1 // pred_check_branch
      %9 = sbr.rel (0) target = $region5
    $region4: #{tpu_custom_call.1} parent=1 // pred_region
      %s11 = ssub.s32 256, 256
      %12 = vsyncadd [#allocation3], %s11
      %s14 = sshll.u32 [#allocation2], 4
      %s15 = int_to_ptr.vmem [resolvable:$true] %s14
      %17 = dma.hbm_to_vmem [thread:$0]  %s0, 256, %s15, [#allocation3]
    $region5: #{tpu_custom_call.1} parent=1 // pred_fallthru
      _
    // Predicated region
    $region6: #{tpu_custom_call.1} parent=1 // pred_check
      _
    $region7: #{tpu_custom_call.1} parent=1 // pred_check_branch
      %19 = sbr.rel (0) target = $region9
    $region8: #{tpu_custom_call.1} parent=1 // pred_region
      %20 = dma.done [#allocation3], 256
    $region9: #{tpu_custom_call.1} parent=1 // pred_fallthru
      _
    %v21 = vld [vmem:[#allocation2] sm:$0xff]
    %v22 = vld [vmem:[#allocation2 + $0x8] sm:$0xff]
    %v23 = vadd.f32 %v21, 3.0
    %v24 = vadd.f32 %v22, 3.0
    %v25 = vmax.f32 %v23, 0.0
    %v26 = vmax.f32 %v24, 0.0
    %v27 = vmin.f32 %v25, 6.0
    %v28 = vmin.f32 %v26, 6.0
    %v29 = vmul.f32 %v27, 0.16666667
    %v30 = vmul.f32 %v28, 0.16666667
    %31 = vst [vmem:[#allocation5] sm:$0xff] %v29
    %32 = vst [vmem:[#allocation5 + $0x8] sm:$0xff] %v30
    // Predicated region
    $region10: #{tpu_custom_call.1} parent=1 // pred_check
      _
    $region11: #{tpu_custom_call.1} parent=1 // pred_check_branch
      %34 = sbr.rel (0) target = $region13
    $region12: #{tpu_custom_call.1} parent=1 // pred_region
      %s36 = ssub.s32 256, 256
      %37 = vsyncadd [#allocation4], %s36
      %s39 = sshll.u32 [#allocation5], 4
      %s40 = int_to_ptr.vmem [resolvable:$true] %s39
      %42 = dma.vmem_to_hbm [thread:$0]  %s40, 256, %s1, [#allocation4]
    $region13: #{tpu_custom_call.1} parent=1 // pred_fallthru
      _
    // Predicated region
    $region14: #{tpu_custom_call.1} parent=1 // pred_check
      _
    $region15: #{tpu_custom_call.1} parent=1 // pred_check_branch
      %44 = sbr.rel (0) target = $region17
    $region16: #{tpu_custom_call.1} parent=1 // pred_region
      %45 = dma.done [#allocation4], 256
    $region17: #{tpu_custom_call.1} parent=1 // pred_fallthru
      _
    %46 = vsyncpa [#allocation3], 1
    %47 = vsyncpa [#allocation4], 1

</llo_original>
